<compile_context>
chip_gen: v7x
topology: tpu7x:2x2x1
jax: 0.10.0
libtpu: 0.0.40
codegen_flags: <defaults>
</compile_context>

<pallas_src>
import jax
import jax.numpy as jnp
from jax.experimental import pallas as pl
from jax.experimental.pallas import tpu as pltpu

# Hyperparameters implied by the module's __init__.
HIDDEN_SIZE = 32      # hidden_size
FLAT_MLP_SIZE = 64    # flat_mlp_size
FLAT_OUT_SIZE = 64    # flat_out_size
GLIMPSES = 1          # the `for i in range(1)` loop / Linear(flat_mlp_size, 1)


def _round_up(n, m):
    return (n + m - 1) // m * m


def attflat_kernel(xf_ref, mask_ref,
                   w1_ref, b1_ref, w2_ref, b2_ref, wm_ref, bm_ref,
                   out_ref):
    # xf_ref:   (TB, S*H) f32 — x with (s, h) flattened onto lanes, batch on sublanes.
    # mask_ref: (TB, S)   f32 — 1.0 where masked (padding), 0.0 where valid.
    # w1_ref:   (H, M)    b1_ref: (1, M)
    # w2_ref:   (1, M)    — the (M, 1) column of the second MLP linear, stored lane-dense.
    # b2_ref:   (1, 1)
    # wm_ref:   (H, F)    bm_ref: (1, F)
    # out_ref:  (TB, F)
    TB = xf_ref.shape[0]
    H, M = w1_ref.shape
    S = mask_ref.shape[1]

    xf = xf_ref[...]                                   # (TB, S*H)
    w1 = w1_ref[...]
    b1 = b1_ref[...]
    w2 = w2_ref[...]
    lane_ids = jax.lax.broadcasted_iota(jnp.int32, (1, S), 1)

    # --- MLP attention logits: one (TB, H) @ (H, M) GEMM per sequence position (S is small) ---
    att = jnp.zeros((TB, S), jnp.float32)
    for s in range(S):                                 # static unroll, S <= a few dozen
        xs = xf[:, s * H:(s + 1) * H]                  # (TB, H) static lane slice
        h = jnp.dot(xs, w1, preferred_element_type=jnp.float32) + b1
        h = jnp.maximum(h, 0.0)                        # ReLU (Dropout = identity at eval)
        a_s = jnp.sum(h * w2, axis=-1, keepdims=True)  # (TB, 1) lane reduce == h @ w2
        att = att + a_s * (lane_ids == s).astype(jnp.float32)   # place logit in lane s
    att = att + b2_ref[...]                            # (TB, S) + (1, 1)

    # --- masked_fill(mask, -1e9) + softmax over the sequence (lane) axis ---
    att = jnp.where(mask_ref[...] > 0.5, jnp.float32(-1e9), att)
    att = att - jnp.max(att, axis=-1, keepdims=True)
    e = jnp.exp(att)
    p = e / jnp.sum(e, axis=-1, keepdims=True)         # (TB, S), exact division

    # --- x_att[b,:] = sum_s p[b,s] * x[b,s,:]  (weighted sum BEFORE the merge GEMM) ---
    x_att = jnp.zeros((TB, H), jnp.float32)
    for s in range(S):
        x_att = x_att + p[:, s:s + 1] * xf[:, s * H:(s + 1) * H]

    # --- linear_merge on the pooled (TB, H) features; dense 2-D output block ---
    out_ref[...] = (jnp.dot(x_att, wm_ref[...], preferred_element_type=jnp.float32)
                    + bm_ref[...]).astype(out_ref.dtype)


def attflat(x, x_mask_bool, params, *, batch_tile=1024):
    """x: (B, S, H) float32, x_mask_bool: (B, 1, 1, S) bool (True == masked)."""
    B, S, H = x.shape
    M = params["w1"].shape[1]
    F = params["wm"].shape[1]
    assert GLIMPSES == 1  # the PyTorch loop cat's exactly one glimpse

    # Batch tile: large tiles amortize the ~0.35 us per-grid-step overhead; x block VMEM is
    # only TB*S*H*4 bytes (no lane padding with the flattened layout), so TB up to a few
    # thousand fits every generation's scoped-VMEM default without flags.
    TB = _round_up(min(batch_tile, _round_up(B, 8)), 8)
    B_pad = _round_up(B, TB)

    # Free view of x (merging the two minor dims of a contiguous array is a bitcast) and a
    # dense (B, S) float mask. S needs no padding; padded batch rows (if any) are all-zero,
    # fully unmasked (-> finite uniform softmax over zero rows) and sliced off below.
    xf = x.reshape(B, S * H).astype(jnp.float32)
    maskf = x_mask_bool.reshape(B, S).astype(jnp.float32)
    if B_pad != B:
        xf = jnp.zeros((B_pad, S * H), jnp.float32).at[:B].set(xf)
        maskf = jnp.zeros((B_pad, S), jnp.float32).at[:B].set(maskf)

    w2_row = params["w2"].reshape(1, M)   # (M, 1) column -> lane-dense (1, M) row

    out = pl.pallas_call(
        attflat_kernel,
        out_shape=jax.ShapeDtypeStruct((B_pad, F), jnp.float32),
        grid=(B_pad // TB,),
        in_specs=[
            pl.BlockSpec((TB, S * H), lambda b: (b, 0)),   # x (flattened seq*hidden on lanes)
            pl.BlockSpec((TB, S),     lambda b: (b, 0)),   # mask (dense 2-D)
            pl.BlockSpec((H, M),      lambda b: (0, 0)),   # w1
            pl.BlockSpec((1, M),      lambda b: (0, 0)),   # b1
            pl.BlockSpec((1, M),      lambda b: (0, 0)),   # w2 (row)
            pl.BlockSpec((1, 1),      lambda b: (0, 0)),   # b2
            pl.BlockSpec((H, F),      lambda b: (0, 0)),   # wm
            pl.BlockSpec((1, F),      lambda b: (0, 0)),   # bm
        ],
        out_specs=pl.BlockSpec((TB, F), lambda b: (b, 0)),
        compiler_params=pltpu.CompilerParams(
            dimension_semantics=("parallel",)),            # batch axis shards across TCs (v7x)
    )(xf, maskf,
      params["w1"], params["b1"], w2_row, params["b2"],
      params["wm"], params["bm"])
    return out[:B]


def attflat_reference(x, x_mask_bool, params):
    """Pure-JAX reference mirroring the PyTorch forward (eval mode)."""
    B, S, H = x.shape
    h = jnp.maximum(x @ params["w1"] + params["b1"], 0.0)
    att = h @ params["w2"] + params["b2"]                       # (B, S, 1)
    mask = x_mask_bool.reshape(B, S, 1)
    att = jnp.where(mask, -1e9, att)
    att = jax.nn.softmax(att, axis=1)
    x_atted = jnp.sum(att * x, axis=1)                          # (B, H)
    return x_atted @ params["wm"] + params["bm"][0]


def init_params(key):
    k1, k2, k3, k4, k5, k6 = jax.random.split(key, 6)
    # Deterministic small-scale init (synthetic weights; no checkpoint load).
    return {
        "w1": jax.random.normal(k1, (HIDDEN_SIZE, FLAT_MLP_SIZE), jnp.float32) * 0.1,
        "b1": jax.random.normal(k2, (1, FLAT_MLP_SIZE), jnp.float32) * 0.1,
        "w2": jax.random.normal(k3, (FLAT_MLP_SIZE, GLIMPSES), jnp.float32) * 0.1,
        "b2": jax.random.normal(k4, (1, GLIMPSES), jnp.float32) * 0.1,
        "wm": jax.random.normal(k5, (HIDDEN_SIZE, FLAT_OUT_SIZE), jnp.float32) * 0.1,
        "bm": jax.random.normal(k6, (1, FLAT_OUT_SIZE), jnp.float32) * 0.1,
    }


def _check(out, ref, name):
    diff = float(jnp.max(jnp.abs(out - ref)))
    assert jnp.allclose(out, ref, atol=2e-3, rtol=2e-3), f"{name}: mismatch vs reference (max |diff|={diff:.3e})"


if __name__ == "__main__":
    key = jax.random.PRNGKey(0)
    kp, kx, kx2, kx3 = jax.random.split(key, 4)
    params = init_params(kp)

    # --- Primary small test (B=2, S=8) ---
    B, S = 2, 8
    x = jax.random.normal(kx, (B, S, HIDDEN_SIZE), jnp.float32)
    x_mask = jnp.zeros((B, 1, 1, S), dtype=jnp.bool_)
    x_mask = x_mask.at[1, 0, 0, 5:].set(True)      # mask last 3 positions of element 1

    out = jax.block_until_ready(attflat(x, x_mask, params))
    assert out.shape == (B, FLAT_OUT_SIZE)
    _check(out, attflat_reference(x, x_mask, params), "test1")

    # --- Extra test: S not a multiple of 8 (no sequence padding needed in this layout) ---
    B2, S2 = 13, 5
    x2 = jax.random.normal(kx2, (B2, S2, HIDDEN_SIZE), jnp.float32)
    lens2 = 1 + (jnp.arange(B2) % S2)              # valid lengths in [1, S2]
    mask2 = (jnp.arange(S2)[None, :] >= lens2[:, None]).reshape(B2, 1, 1, S2)
    out2 = jax.block_until_ready(attflat(x2, mask2, params))
    _check(out2, attflat_reference(x2, mask2, params), "test2")

    # --- Extra test: multi-step grid + batch padding (small batch_tile override) ---
    B3, S3 = 20, 8
    x3 = jax.random.normal(kx3, (B3, S3, HIDDEN_SIZE), jnp.float32)
    lens3 = 1 + (jnp.arange(B3) % S3)
    mask3 = (jnp.arange(S3)[None, :] >= lens3[:, None]).reshape(B3, 1, 1, S3)
    out3 = jax.block_until_ready(attflat(x3, mask3, params, batch_tile=8))
    _check(out3, attflat_reference(x3, mask3, params), "test3")

    print("KERNEL_OK")
</pallas_src>

<mosaic_0001>
module attributes {stable_mosaic.version = 11 : i64} {
  func.func @attflat_kernel(%arg0: i32, %arg1: memref<8x256xf32, #tpu.memory_space<vmem>>, %arg2: memref<8x8xf32, #tpu.memory_space<vmem>>, %arg3: memref<32x64xf32, #tpu.memory_space<vmem>>, %arg4: memref<1x64xf32, #tpu.memory_space<vmem>>, %arg5: memref<1x64xf32, #tpu.memory_space<vmem>>, %arg6: memref<1x1xf32, #tpu.memory_space<vmem>>, %arg7: memref<32x64xf32, #tpu.memory_space<vmem>>, %arg8: memref<1x64xf32, #tpu.memory_space<vmem>>, %arg9: memref<8x64xf32, #tpu.memory_space<vmem>>) attributes {dimension_semantics = [#tpu.dimension_semantics<parallel>], iteration_bounds = array<i64: 1>, scalar_prefetch = 0 : i64, scratch_operands = 0 : i64, tpu.core_type = #tpu.core_type<tc>, window_params = [{transform_indices = @transform_0, window_bounds = array<i64: 8, 256>}, {transform_indices = @transform_1, window_bounds = array<i64: 8, 8>}, {pipeline_mode = #tpu.pipeline_mode<synchronous>, transform_indices = @transform_2, window_bounds = array<i64: 32, 64>}, {pipeline_mode = #tpu.pipeline_mode<synchronous>, transform_indices = @transform_3, window_bounds = array<i64: 1, 64>}, {pipeline_mode = #tpu.pipeline_mode<synchronous>, transform_indices = @transform_4, window_bounds = array<i64: 1, 64>}, {pipeline_mode = #tpu.pipeline_mode<synchronous>, transform_indices = @transform_5, window_bounds = array<i64: 1, 1>}, {pipeline_mode = #tpu.pipeline_mode<synchronous>, transform_indices = @transform_6, window_bounds = array<i64: 32, 64>}, {pipeline_mode = #tpu.pipeline_mode<synchronous>, transform_indices = @transform_7, window_bounds = array<i64: 1, 64>}, {transform_indices = @transform_8, window_bounds = array<i64: 8, 64>}]} {
    %c0 = arith.constant 0 : index
    %c0_0 = arith.constant 0 : index
    %0 = vector.load %arg1[%c0, %c0_0] : memref<8x256xf32, #tpu.memory_space<vmem>>, vector<8x256xf32>
    %c0_1 = arith.constant 0 : index
    %c0_2 = arith.constant 0 : index
    %1 = vector.load %arg3[%c0_1, %c0_2] : memref<32x64xf32, #tpu.memory_space<vmem>>, vector<32x64xf32>
    %c0_3 = arith.constant 0 : index
    %c0_4 = arith.constant 0 : index
    %2 = vector.load %arg4[%c0_3, %c0_4] : memref<1x64xf32, #tpu.memory_space<vmem>>, vector<1x64xf32>
    %c0_5 = arith.constant 0 : index
    %c0_6 = arith.constant 0 : index
    %3 = vector.load %arg5[%c0_5, %c0_6] : memref<1x64xf32, #tpu.memory_space<vmem>>, vector<1x64xf32>
    %4 = tpu.iota {dimensions = array<i32: 1>} : vector<1x8xi32>
    %cst = arith.constant 0.000000e+00 : f32
    %5 = vector.broadcast %cst : f32 to vector<8x8xf32>
    %6 = vector.extract_strided_slice %0 {offsets = [0, 0], sizes = [8, 32], strides = [1, 1]} : vector<8x256xf32> to vector<8x32xf32>
    %cst_7 = arith.constant dense<0.000000e+00> : vector<8x64xf32>
    %7 = tpu.matmul %6, %1, %cst_7 {dimension_numbers = #tpu.dot_dimension_numbers<[1], [0], [0], [1], [0, 0, 1, 1], [], []>} : vector<8x32xf32>, vector<32x64xf32>, vector<8x64xf32> -> vector<8x64xf32>
    %8 = vector.broadcast %2 : vector<1x64xf32> to vector<8x64xf32>
    %9 = arith.addf %7, %8 : vector<8x64xf32>
    %cst_8 = arith.constant 0.000000e+00 : f32
    %10 = vector.broadcast %cst_8 : f32 to vector<8x64xf32>
    %11 = arith.maximumf %9, %10 : vector<8x64xf32>
    %12 = vector.broadcast %3 : vector<1x64xf32> to vector<8x64xf32>
    %13 = arith.mulf %11, %12 : vector<8x64xf32>
    %cst_9 = arith.constant dense<0.000000e+00> : vector<8xf32>
    %14 = vector.multi_reduction <add>, %13, %cst_9 [1] : vector<8x64xf32> to vector<8xf32>
    %15 = vector.shape_cast %14 : vector<8xf32> to vector<8x1xf32>
    %c0_i32 = arith.constant 0 : i32
    %16 = vector.broadcast %c0_i32 : i32 to vector<1x8xi32>
    %17 = arith.cmpi eq, %4, %16 : vector<1x8xi32>
    %18 = arith.extui %17 : vector<1x8xi1> to vector<1x8xi32>
    %19 = arith.sitofp %18 : vector<1x8xi32> to vector<1x8xf32>
    %20 = vector.broadcast %15 : vector<8x1xf32> to vector<8x8xf32>
    %21 = vector.broadcast %19 : vector<1x8xf32> to vector<8x8xf32>
    %22 = arith.mulf %20, %21 : vector<8x8xf32>
    %23 = arith.addf %5, %22 : vector<8x8xf32>
    %24 = vector.extract_strided_slice %0 {offsets = [0, 32], sizes = [8, 32], strides = [1, 1]} : vector<8x256xf32> to vector<8x32xf32>
    %cst_10 = arith.constant dense<0.000000e+00> : vector<8x64xf32>
    %25 = tpu.matmul %24, %1, %cst_10 {dimension_numbers = #tpu.dot_dimension_numbers<[1], [0], [0], [1], [0, 0, 1, 1], [], []>} : vector<8x32xf32>, vector<32x64xf32>, vector<8x64xf32> -> vector<8x64xf32>
    %26 = vector.broadcast %2 : vector<1x64xf32> to vector<8x64xf32>
    %27 = arith.addf %25, %26 : vector<8x64xf32>
    %cst_11 = arith.constant 0.000000e+00 : f32
    %28 = vector.broadcast %cst_11 : f32 to vector<8x64xf32>
    %29 = arith.maximumf %27, %28 : vector<8x64xf32>
    %30 = vector.broadcast %3 : vector<1x64xf32> to vector<8x64xf32>
    %31 = arith.mulf %29, %30 : vector<8x64xf32>
    %cst_12 = arith.constant dense<0.000000e+00> : vector<8xf32>
    %32 = vector.multi_reduction <add>, %31, %cst_12 [1] : vector<8x64xf32> to vector<8xf32>
    %33 = vector.shape_cast %32 : vector<8xf32> to vector<8x1xf32>
    %c1_i32 = arith.constant 1 : i32
    %34 = vector.broadcast %c1_i32 : i32 to vector<1x8xi32>
    %35 = arith.cmpi eq, %4, %34 : vector<1x8xi32>
    %36 = arith.extui %35 : vector<1x8xi1> to vector<1x8xi32>
    %37 = arith.sitofp %36 : vector<1x8xi32> to vector<1x8xf32>
    %38 = vector.broadcast %33 : vector<8x1xf32> to vector<8x8xf32>
    %39 = vector.broadcast %37 : vector<1x8xf32> to vector<8x8xf32>
    %40 = arith.mulf %38, %39 : vector<8x8xf32>
    %41 = arith.addf %23, %40 : vector<8x8xf32>
    %42 = vector.extract_strided_slice %0 {offsets = [0, 64], sizes = [8, 32], strides = [1, 1]} : vector<8x256xf32> to vector<8x32xf32>
    %cst_13 = arith.constant dense<0.000000e+00> : vector<8x64xf32>
    %43 = tpu.matmul %42, %1, %cst_13 {dimension_numbers = #tpu.dot_dimension_numbers<[1], [0], [0], [1], [0, 0, 1, 1], [], []>} : vector<8x32xf32>, vector<32x64xf32>, vector<8x64xf32> -> vector<8x64xf32>
    %44 = vector.broadcast %2 : vector<1x64xf32> to vector<8x64xf32>
    %45 = arith.addf %43, %44 : vector<8x64xf32>
    %cst_14 = arith.constant 0.000000e+00 : f32
    %46 = vector.broadcast %cst_14 : f32 to vector<8x64xf32>
    %47 = arith.maximumf %45, %46 : vector<8x64xf32>
    %48 = vector.broadcast %3 : vector<1x64xf32> to vector<8x64xf32>
    %49 = arith.mulf %47, %48 : vector<8x64xf32>
    %cst_15 = arith.constant dense<0.000000e+00> : vector<8xf32>
    %50 = vector.multi_reduction <add>, %49, %cst_15 [1] : vector<8x64xf32> to vector<8xf32>
    %51 = vector.shape_cast %50 : vector<8xf32> to vector<8x1xf32>
    %c2_i32 = arith.constant 2 : i32
    %52 = vector.broadcast %c2_i32 : i32 to vector<1x8xi32>
    %53 = arith.cmpi eq, %4, %52 : vector<1x8xi32>
    %54 = arith.extui %53 : vector<1x8xi1> to vector<1x8xi32>
    %55 = arith.sitofp %54 : vector<1x8xi32> to vector<1x8xf32>
    %56 = vector.broadcast %51 : vector<8x1xf32> to vector<8x8xf32>
    %57 = vector.broadcast %55 : vector<1x8xf32> to vector<8x8xf32>
    %58 = arith.mulf %56, %57 : vector<8x8xf32>
    %59 = arith.addf %41, %58 : vector<8x8xf32>
    %60 = vector.extract_strided_slice %0 {offsets = [0, 96], sizes = [8, 32], strides = [1, 1]} : vector<8x256xf32> to vector<8x32xf32>
    %cst_16 = arith.constant dense<0.000000e+00> : vector<8x64xf32>
    %61 = tpu.matmul %60, %1, %cst_16 {dimension_numbers = #tpu.dot_dimension_numbers<[1], [0], [0], [1], [0, 0, 1, 1], [], []>} : vector<8x32xf32>, vector<32x64xf32>, vector<8x64xf32> -> vector<8x64xf32>
    %62 = vector.broadcast %2 : vector<1x64xf32> to vector<8x64xf32>
    %63 = arith.addf %61, %62 : vector<8x64xf32>
    %cst_17 = arith.constant 0.000000e+00 : f32
    %64 = vector.broadcast %cst_17 : f32 to vector<8x64xf32>
    %65 = arith.maximumf %63, %64 : vector<8x64xf32>
    %66 = vector.broadcast %3 : vector<1x64xf32> to vector<8x64xf32>
    %67 = arith.mulf %65, %66 : vector<8x64xf32>
    %cst_18 = arith.constant dense<0.000000e+00> : vector<8xf32>
    %68 = vector.multi_reduction <add>, %67, %cst_18 [1] : vector<8x64xf32> to vector<8xf32>
    %69 = vector.shape_cast %68 : vector<8xf32> to vector<8x1xf32>
    %c3_i32 = arith.constant 3 : i32
    %70 = vector.broadcast %c3_i32 : i32 to vector<1x8xi32>
    %71 = arith.cmpi eq, %4, %70 : vector<1x8xi32>
    %72 = arith.extui %71 : vector<1x8xi1> to vector<1x8xi32>
    %73 = arith.sitofp %72 : vector<1x8xi32> to vector<1x8xf32>
    %74 = vector.broadcast %69 : vector<8x1xf32> to vector<8x8xf32>
    %75 = vector.broadcast %73 : vector<1x8xf32> to vector<8x8xf32>
    %76 = arith.mulf %74, %75 : vector<8x8xf32>
    %77 = arith.addf %59, %76 : vector<8x8xf32>
    %78 = vector.extract_strided_slice %0 {offsets = [0, 128], sizes = [8, 32], strides = [1, 1]} : vector<8x256xf32> to vector<8x32xf32>
    %cst_19 = arith.constant dense<0.000000e+00> : vector<8x64xf32>
    %79 = tpu.matmul %78, %1, %cst_19 {dimension_numbers = #tpu.dot_dimension_numbers<[1], [0], [0], [1], [0, 0, 1, 1], [], []>} : vector<8x32xf32>, vector<32x64xf32>, vector<8x64xf32> -> vector<8x64xf32>
    %80 = vector.broadcast %2 : vector<1x64xf32> to vector<8x64xf32>
    %81 = arith.addf %79, %80 : vector<8x64xf32>
    %cst_20 = arith.constant 0.000000e+00 : f32
    %82 = vector.broadcast %cst_20 : f32 to vector<8x64xf32>
    %83 = arith.maximumf %81, %82 : vector<8x64xf32>
    %84 = vector.broadcast %3 : vector<1x64xf32> to vector<8x64xf32>
    %85 = arith.mulf %83, %84 : vector<8x64xf32>
    %cst_21 = arith.constant dense<0.000000e+00> : vector<8xf32>
    %86 = vector.multi_reduction <add>, %85, %cst_21 [1] : vector<8x64xf32> to vector<8xf32>
    %87 = vector.shape_cast %86 : vector<8xf32> to vector<8x1xf32>
    %c4_i32 = arith.constant 4 : i32
    %88 = vector.broadcast %c4_i32 : i32 to vector<1x8xi32>
    %89 = arith.cmpi eq, %4, %88 : vector<1x8xi32>
    %90 = arith.extui %89 : vector<1x8xi1> to vector<1x8xi32>
    %91 = arith.sitofp %90 : vector<1x8xi32> to vector<1x8xf32>
    %92 = vector.broadcast %87 : vector<8x1xf32> to vector<8x8xf32>
    %93 = vector.broadcast %91 : vector<1x8xf32> to vector<8x8xf32>
    %94 = arith.mulf %92, %93 : vector<8x8xf32>
    %95 = arith.addf %77, %94 : vector<8x8xf32>
    %96 = vector.extract_strided_slice %0 {offsets = [0, 160], sizes = [8, 32], strides = [1, 1]} : vector<8x256xf32> to vector<8x32xf32>
    %cst_22 = arith.constant dense<0.000000e+00> : vector<8x64xf32>
    %97 = tpu.matmul %96, %1, %cst_22 {dimension_numbers = #tpu.dot_dimension_numbers<[1], [0], [0], [1], [0, 0, 1, 1], [], []>} : vector<8x32xf32>, vector<32x64xf32>, vector<8x64xf32> -> vector<8x64xf32>
    %98 = vector.broadcast %2 : vector<1x64xf32> to vector<8x64xf32>
    %99 = arith.addf %97, %98 : vector<8x64xf32>
    %cst_23 = arith.constant 0.000000e+00 : f32
    %100 = vector.broadcast %cst_23 : f32 to vector<8x64xf32>
    %101 = arith.maximumf %99, %100 : vector<8x64xf32>
    %102 = vector.broadcast %3 : vector<1x64xf32> to vector<8x64xf32>
    %103 = arith.mulf %101, %102 : vector<8x64xf32>
    %cst_24 = arith.constant dense<0.000000e+00> : vector<8xf32>
    %104 = vector.multi_reduction <add>, %103, %cst_24 [1] : vector<8x64xf32> to vector<8xf32>
    %105 = vector.shape_cast %104 : vector<8xf32> to vector<8x1xf32>
    %c5_i32 = arith.constant 5 : i32
    %106 = vector.broadcast %c5_i32 : i32 to vector<1x8xi32>
    %107 = arith.cmpi eq, %4, %106 : vector<1x8xi32>
    %108 = arith.extui %107 : vector<1x8xi1> to vector<1x8xi32>
    %109 = arith.sitofp %108 : vector<1x8xi32> to vector<1x8xf32>
    %110 = vector.broadcast %105 : vector<8x1xf32> to vector<8x8xf32>
    %111 = vector.broadcast %109 : vector<1x8xf32> to vector<8x8xf32>
    %112 = arith.mulf %110, %111 : vector<8x8xf32>
    %113 = arith.addf %95, %112 : vector<8x8xf32>
    %114 = vector.extract_strided_slice %0 {offsets = [0, 192], sizes = [8, 32], strides = [1, 1]} : vector<8x256xf32> to vector<8x32xf32>
    %cst_25 = arith.constant dense<0.000000e+00> : vector<8x64xf32>
    %115 = tpu.matmul %114, %1, %cst_25 {dimension_numbers = #tpu.dot_dimension_numbers<[1], [0], [0], [1], [0, 0, 1, 1], [], []>} : vector<8x32xf32>, vector<32x64xf32>, vector<8x64xf32> -> vector<8x64xf32>
    %116 = vector.broadcast %2 : vector<1x64xf32> to vector<8x64xf32>
    %117 = arith.addf %115, %116 : vector<8x64xf32>
    %cst_26 = arith.constant 0.000000e+00 : f32
    %118 = vector.broadcast %cst_26 : f32 to vector<8x64xf32>
    %119 = arith.maximumf %117, %118 : vector<8x64xf32>
    %120 = vector.broadcast %3 : vector<1x64xf32> to vector<8x64xf32>
    %121 = arith.mulf %119, %120 : vector<8x64xf32>
    %cst_27 = arith.constant dense<0.000000e+00> : vector<8xf32>
    %122 = vector.multi_reduction <add>, %121, %cst_27 [1] : vector<8x64xf32> to vector<8xf32>
    %123 = vector.shape_cast %122 : vector<8xf32> to vector<8x1xf32>
    %c6_i32 = arith.constant 6 : i32
    %124 = vector.broadcast %c6_i32 : i32 to vector<1x8xi32>
    %125 = arith.cmpi eq, %4, %124 : vector<1x8xi32>
    %126 = arith.extui %125 : vector<1x8xi1> to vector<1x8xi32>
    %127 = arith.sitofp %126 : vector<1x8xi32> to vector<1x8xf32>
    %128 = vector.broadcast %123 : vector<8x1xf32> to vector<8x8xf32>
    %129 = vector.broadcast %127 : vector<1x8xf32> to vector<8x8xf32>
    %130 = arith.mulf %128, %129 : vector<8x8xf32>
    %131 = arith.addf %113, %130 : vector<8x8xf32>
    %132 = vector.extract_strided_slice %0 {offsets = [0, 224], sizes = [8, 32], strides = [1, 1]} : vector<8x256xf32> to vector<8x32xf32>
    %cst_28 = arith.constant dense<0.000000e+00> : vector<8x64xf32>
    %133 = tpu.matmul %132, %1, %cst_28 {dimension_numbers = #tpu.dot_dimension_numbers<[1], [0], [0], [1], [0, 0, 1, 1], [], []>} : vector<8x32xf32>, vector<32x64xf32>, vector<8x64xf32> -> vector<8x64xf32>
    %134 = vector.broadcast %2 : vector<1x64xf32> to vector<8x64xf32>
    %135 = arith.addf %133, %134 : vector<8x64xf32>
    %cst_29 = arith.constant 0.000000e+00 : f32
    %136 = vector.broadcast %cst_29 : f32 to vector<8x64xf32>
    %137 = arith.maximumf %135, %136 : vector<8x64xf32>
    %138 = vector.broadcast %3 : vector<1x64xf32> to vector<8x64xf32>
    %139 = arith.mulf %137, %138 : vector<8x64xf32>
    %cst_30 = arith.constant dense<0.000000e+00> : vector<8xf32>
    %140 = vector.multi_reduction <add>, %139, %cst_30 [1] : vector<8x64xf32> to vector<8xf32>
    %141 = vector.shape_cast %140 : vector<8xf32> to vector<8x1xf32>
    %c7_i32 = arith.constant 7 : i32
    %142 = vector.broadcast %c7_i32 : i32 to vector<1x8xi32>
    %143 = arith.cmpi eq, %4, %142 : vector<1x8xi32>
    %144 = arith.extui %143 : vector<1x8xi1> to vector<1x8xi32>
    %145 = arith.sitofp %144 : vector<1x8xi32> to vector<1x8xf32>
    %146 = vector.broadcast %141 : vector<8x1xf32> to vector<8x8xf32>
    %147 = vector.broadcast %145 : vector<1x8xf32> to vector<8x8xf32>
    %148 = arith.mulf %146, %147 : vector<8x8xf32>
    %149 = arith.addf %131, %148 : vector<8x8xf32>
    %c0_31 = arith.constant 0 : index
    %c0_32 = arith.constant 0 : index
    %150 = vector.load %arg6[%c0_31, %c0_32] : memref<1x1xf32, #tpu.memory_space<vmem>>, vector<1x1xf32>
    %151 = vector.broadcast %150 : vector<1x1xf32> to vector<8x8xf32>
    %152 = arith.addf %149, %151 : vector<8x8xf32>
    %c0_33 = arith.constant 0 : index
    %c0_34 = arith.constant 0 : index
    %153 = vector.load %arg2[%c0_33, %c0_34] : memref<8x8xf32, #tpu.memory_space<vmem>>, vector<8x8xf32>
    %cst_35 = arith.constant 5.000000e-01 : f32
    %154 = vector.broadcast %cst_35 : f32 to vector<8x8xf32>
    %155 = arith.cmpf ogt, %153, %154 : vector<8x8xf32>
    %cst_36 = arith.constant -1.000000e+09 : f32
    %156 = vector.broadcast %cst_36 : f32 to vector<8x8xf32>
    %157 = arith.select %155, %156, %152 : vector<8x8xi1>, vector<8x8xf32>
    %cst_37 = arith.constant dense<0xFF800000> : vector<8xf32>
    %158 = vector.multi_reduction <maximumf>, %157, %cst_37 [1] : vector<8x8xf32> to vector<8xf32>
    %159 = vector.shape_cast %158 : vector<8xf32> to vector<8x1xf32>
    %160 = vector.broadcast %159 : vector<8x1xf32> to vector<8x8xf32>
    %161 = arith.subf %157, %160 : vector<8x8xf32>
    %162 = math.exp %161 : vector<8x8xf32>
    %cst_38 = arith.constant dense<0.000000e+00> : vector<8xf32>
    %163 = vector.multi_reduction <add>, %162, %cst_38 [1] : vector<8x8xf32> to vector<8xf32>
    %164 = vector.shape_cast %163 : vector<8xf32> to vector<8x1xf32>
    %165 = vector.broadcast %164 : vector<8x1xf32> to vector<8x8xf32>
    %166 = arith.divf %162, %165 : vector<8x8xf32>
    %cst_39 = arith.constant 0.000000e+00 : f32
    %167 = vector.broadcast %cst_39 : f32 to vector<8x32xf32>
    %168 = vector.extract_strided_slice %166 {offsets = [0, 0], sizes = [8, 1], strides = [1, 1]} : vector<8x8xf32> to vector<8x1xf32>
    %169 = vector.extract_strided_slice %0 {offsets = [0, 0], sizes = [8, 32], strides = [1, 1]} : vector<8x256xf32> to vector<8x32xf32>
    %170 = vector.broadcast %168 : vector<8x1xf32> to vector<8x32xf32>
    %171 = arith.mulf %170, %169 : vector<8x32xf32>
    %172 = arith.addf %167, %171 : vector<8x32xf32>
    %173 = vector.extract_strided_slice %166 {offsets = [0, 1], sizes = [8, 1], strides = [1, 1]} : vector<8x8xf32> to vector<8x1xf32>
    %174 = vector.extract_strided_slice %0 {offsets = [0, 32], sizes = [8, 32], strides = [1, 1]} : vector<8x256xf32> to vector<8x32xf32>
    %175 = vector.broadcast %173 : vector<8x1xf32> to vector<8x32xf32>
    %176 = arith.mulf %175, %174 : vector<8x32xf32>
    %177 = arith.addf %172, %176 : vector<8x32xf32>
    %178 = vector.extract_strided_slice %166 {offsets = [0, 2], sizes = [8, 1], strides = [1, 1]} : vector<8x8xf32> to vector<8x1xf32>
    %179 = vector.extract_strided_slice %0 {offsets = [0, 64], sizes = [8, 32], strides = [1, 1]} : vector<8x256xf32> to vector<8x32xf32>
    %180 = vector.broadcast %178 : vector<8x1xf32> to vector<8x32xf32>
    %181 = arith.mulf %180, %179 : vector<8x32xf32>
    %182 = arith.addf %177, %181 : vector<8x32xf32>
    %183 = vector.extract_strided_slice %166 {offsets = [0, 3], sizes = [8, 1], strides = [1, 1]} : vector<8x8xf32> to vector<8x1xf32>
    %184 = vector.extract_strided_slice %0 {offsets = [0, 96], sizes = [8, 32], strides = [1, 1]} : vector<8x256xf32> to vector<8x32xf32>
    %185 = vector.broadcast %183 : vector<8x1xf32> to vector<8x32xf32>
    %186 = arith.mulf %185, %184 : vector<8x32xf32>
    %187 = arith.addf %182, %186 : vector<8x32xf32>
    %188 = vector.extract_strided_slice %166 {offsets = [0, 4], sizes = [8, 1], strides = [1, 1]} : vector<8x8xf32> to vector<8x1xf32>
    %189 = vector.extract_strided_slice %0 {offsets = [0, 128], sizes = [8, 32], strides = [1, 1]} : vector<8x256xf32> to vector<8x32xf32>
    %190 = vector.broadcast %188 : vector<8x1xf32> to vector<8x32xf32>
    %191 = arith.mulf %190, %189 : vector<8x32xf32>
    %192 = arith.addf %187, %191 : vector<8x32xf32>
    %193 = vector.extract_strided_slice %166 {offsets = [0, 5], sizes = [8, 1], strides = [1, 1]} : vector<8x8xf32> to vector<8x1xf32>
    %194 = vector.extract_strided_slice %0 {offsets = [0, 160], sizes = [8, 32], strides = [1, 1]} : vector<8x256xf32> to vector<8x32xf32>
    %195 = vector.broadcast %193 : vector<8x1xf32> to vector<8x32xf32>
    %196 = arith.mulf %195, %194 : vector<8x32xf32>
    %197 = arith.addf %192, %196 : vector<8x32xf32>
    %198 = vector.extract_strided_slice %166 {offsets = [0, 6], sizes = [8, 1], strides = [1, 1]} : vector<8x8xf32> to vector<8x1xf32>
    %199 = vector.extract_strided_slice %0 {offsets = [0, 192], sizes = [8, 32], strides = [1, 1]} : vector<8x256xf32> to vector<8x32xf32>
    %200 = vector.broadcast %198 : vector<8x1xf32> to vector<8x32xf32>
    %201 = arith.mulf %200, %199 : vector<8x32xf32>
    %202 = arith.addf %197, %201 : vector<8x32xf32>
    %203 = vector.extract_strided_slice %166 {offsets = [0, 7], sizes = [8, 1], strides = [1, 1]} : vector<8x8xf32> to vector<8x1xf32>
    %204 = vector.extract_strided_slice %0 {offsets = [0, 224], sizes = [8, 32], strides = [1, 1]} : vector<8x256xf32> to vector<8x32xf32>
    %205 = vector.broadcast %203 : vector<8x1xf32> to vector<8x32xf32>
    %206 = arith.mulf %205, %204 : vector<8x32xf32>
    %207 = arith.addf %202, %206 : vector<8x32xf32>
    %c0_40 = arith.constant 0 : index
    %c0_41 = arith.constant 0 : index
    %208 = vector.load %arg7[%c0_40, %c0_41] : memref<32x64xf32, #tpu.memory_space<vmem>>, vector<32x64xf32>
    %cst_42 = arith.constant dense<0.000000e+00> : vector<8x64xf32>
    %209 = tpu.matmul %207, %208, %cst_42 {dimension_numbers = #tpu.dot_dimension_numbers<[1], [0], [0], [1], [0, 0, 1, 1], [], []>} : vector<8x32xf32>, vector<32x64xf32>, vector<8x64xf32> -> vector<8x64xf32>
    %c0_43 = arith.constant 0 : index
    %c0_44 = arith.constant 0 : index
    %210 = vector.load %arg8[%c0_43, %c0_44] : memref<1x64xf32, #tpu.memory_space<vmem>>, vector<1x64xf32>
    %211 = vector.broadcast %210 : vector<1x64xf32> to vector<8x64xf32>
    %212 = arith.addf %209, %211 : vector<8x64xf32>
    %c0_45 = arith.constant 0 : index
    %c0_46 = arith.constant 0 : index
    %213 = vector.load %arg9[%c0_45, %c0_46] : memref<8x64xf32, #tpu.memory_space<vmem>>, vector<8x64xf32>
    tpu.vector_store %arg9[%c0_45, %c0_46], %212 {strides = array<i32>} : memref<8x64xf32, #tpu.memory_space<vmem>>, vector<8x64xf32>,
    return
  }
  func.func @transform_0(%arg0: i32) -> (i32, i32) {
    %c0_i32 = arith.constant 0 : i32
    %c0_i32_0 = arith.constant 0 : i32
    return %arg0, %c0_i32 : i32, i32
  }
  func.func @transform_1(%arg0: i32) -> (i32, i32) {
    %c0_i32 = arith.constant 0 : i32
    %c0_i32_0 = arith.constant 0 : i32
    return %arg0, %c0_i32 : i32, i32
  }
  func.func @transform_2(%arg0: i32) -> (i32, i32) {
    %c0_i32 = arith.constant 0 : i32
    %c0_i32_0 = arith.constant 0 : i32
    %c0_i32_1 = arith.constant 0 : i32
    return %c0_i32, %c0_i32_0 : i32, i32
  }
  func.func @transform_3(%arg0: i32) -> (i32, i32) {
    %c0_i32 = arith.constant 0 : i32
    %c0_i32_0 = arith.constant 0 : i32
    %c0_i32_1 = arith.constant 0 : i32
    return %c0_i32, %c0_i32_0 : i32, i32
  }
  func.func @transform_4(%arg0: i32) -> (i32, i32) {
    %c0_i32 = arith.constant 0 : i32
    %c0_i32_0 = arith.constant 0 : i32
    %c0_i32_1 = arith.constant 0 : i32
    return %c0_i32, %c0_i32_0 : i32, i32
  }
  func.func @transform_5(%arg0: i32) -> (i32, i32) {
    %c0_i32 = arith.constant 0 : i32
    %c0_i32_0 = arith.constant 0 : i32
    %c0_i32_1 = arith.constant 0 : i32
    return %c0_i32, %c0_i32_0 : i32, i32
  }
  func.func @transform_6(%arg0: i32) -> (i32, i32) {
    %c0_i32 = arith.constant 0 : i32
    %c0_i32_0 = arith.constant 0 : i32
    %c0_i32_1 = arith.constant 0 : i32
    return %c0_i32, %c0_i32_0 : i32, i32
  }
  func.func @transform_7(%arg0: i32) -> (i32, i32) {
    %c0_i32 = arith.constant 0 : i32
    %c0_i32_0 = arith.constant 0 : i32
    %c0_i32_1 = arith.constant 0 : i32
    return %c0_i32, %c0_i32_0 : i32, i32
  }
  func.func @transform_8(%arg0: i32) -> (i32, i32) {
    %c0_i32 = arith.constant 0 : i32
    %c0_i32_0 = arith.constant 0 : i32
    return %arg0, %c0_i32 : i32, i32
  }
}

</mosaic_0001>

<llo_original>
// kernel: tpu_custom_call.1
$region0: #{tpu_custom_call.1}
  #allocation0 [shape = 'u32[]', space=smem, size = 0x4, offset = 0x4, fixed_abs, tag = 'smem constant byte address 0x4 - core index']
  #allocation1 [shape = 'u32[144,128]{1,0:T(1,128)}', space=vmem, size = 0x12000, scoped, tag = 'internal scratch']
  #allocation2 [shape = 'f32[1,1]{1,0:T(1,128)S(1)}', space=vmem, size = 0x200, scoped, tag = 'scoped memory for tpu_custom_call.1']
  %s0 = inlined_call_operand.hbm [shape: f32[8,256], index: 0, kind: input, shape index: {}]
  %s1 = inlined_call_operand.hbm [shape: f32[8,8], index: 1, kind: input, shape index: {}]
  %s2 = inlined_call_operand.hbm [shape: f32[32,64], index: 2, kind: input, shape index: {}]
  %s3 = inlined_call_operand.vmem [shape: f32[1,64], index: 3, kind: input, shape index: {}]
  %s4 = inlined_call_operand.vmem [shape: f32[1,64], index: 4, kind: input, shape index: {}]
  %s5 = inlined_call_operand.<no memory space> [shape: f32[1,1], index: 5, kind: input, shape index: {}]
  %s6 = inlined_call_operand.hbm [shape: f32[32,64], index: 6, kind: input, shape index: {}]
  %s7 = inlined_call_operand.vmem [shape: f32[1,64], index: 7, kind: input, shape index: {}]
  %s8 = inlined_call_operand.hbm [shape: f32[8,64], index: 8, kind: output, shape index: {}]
  %s9 = sld [smem:[#allocation0]]
  $region58: #{tpu_custom_call.1} parent=0
    _
  %s11 = ssub.s32 1, %s9
  %s12 = scalar_select 0, %s11, %s9
  %v13 = vstv %s5
  %14 = vst [vmem:[#allocation2] sm:$0x1] %v13
  $region1: #{tpu_custom_call.1} parent=0
    #allocation3 [shape = 'u8[8192]{0}', space=vmem, size = 0x2000, scoped, tag = 'input window, operand 0, single buffered']
    #allocation4 [shape = 's32[1]{0}', space=sflag, size = 0x4, scoped, tag = 'scoped memory for tpu_custom_call.1']
    #allocation5 [shape = 's32[1]{0}', space=sflag, size = 0x4, scoped, tag = 'scoped memory for tpu_custom_call.1']
    #allocation6 [shape = 'u8[4096]{0}', space=vmem, size = 0x1000, scoped, tag = 'input window, operand 1, single buffered']
    #allocation7 [shape = 's32[1]{0}', space=sflag, size = 0x4, scoped, tag = 'scoped memory for tpu_custom_call.1']
    #allocation8 [shape = 'u8[16384]{0}', space=vmem, size = 0x4000, scoped, tag = 'input window, operand 2, single buffered']
    #allocation9 [shape = 'u8[16384]{0}', space=vmem, size = 0x4000, scoped, tag = 'input window, operand 6, single buffered']
    #allocation10 [shape = 's32[1]{0}', space=sflag, size = 0x4, scoped, tag = 'scoped memory for tpu_custom_call.1']
    #allocation11 [shape = 'u8[4096]{0}', space=vmem, size = 0x1000, scoped, tag = 'output window, operand 0, single buffered']
    %15 = vsyncpa [#allocation4], 0
    %16 = vsyncpa [#allocation7], 0
    %17 = vsyncpa [#allocation10], 0
    %18 = vsyncpa [#allocation5], 0
    // Predicated region
    $region2: #{tpu_custom_call.1} parent=1 // pred_check
      _
    $region3: #{tpu_custom_call.1} parent=1 // pred_check_branch
      %20 = sbr.rel (0) target = $region5
    $region4: #{tpu_custom_call.1} parent=1 // pred_region
      %s22 = ssub.s32 256, 256
      %23 = vsyncadd [#allocation4], %s22
      %s25 = sshll.u32 [#allocation3], 4
      %s26 = int_to_ptr.vmem [resolvable:$true] %s25
      %28 = dma.hbm_to_vmem [thread:$0]  %s0, 256, %s26, [#allocation4]
    $region5: #{tpu_custom_call.1} parent=1 // pred_fallthru
      _
    // Predicated region
    $region6: #{tpu_custom_call.1} parent=1 // pred_check
      _
    $region7: #{tpu_custom_call.1} parent=1 // pred_check_branch
      %30 = sbr.rel (0) target = $region9
    $region8: #{tpu_custom_call.1} parent=1 // pred_region
      %s32 = ssub.s32 128, 128
      %33 = vsyncadd [#allocation7], %s32
      %s35 = sshll.u32 [#allocation6], 4
      %s36 = int_to_ptr.vmem [resolvable:$true] %s35
      %38 = dma.hbm_to_vmem [thread:$0]  %s1, 128, %s36, [#allocation7]
    $region9: #{tpu_custom_call.1} parent=1 // pred_fallthru
      _
    // Predicated region
    $region10: #{tpu_custom_call.1} parent=1 // pred_check
      _
    $region11: #{tpu_custom_call.1} parent=1 // pred_check_branch
      %40 = sbr.rel (0) target = $region13
    $region12: #{tpu_custom_call.1} parent=1 // pred_region
      %s42 = ssub.s32 512, 512
      %43 = vsyncadd [#allocation7], %s42
      %s44 = sshll.u32 [#allocation8], 4
      %s45 = int_to_ptr.vmem [resolvable:$true] %s44
      %50 = dma.hbm_to_vmem [thread:$0]  %s2, 512, %s45, [#allocation7], 128, 128, 8
    $region13: #{tpu_custom_call.1} parent=1 // pred_fallthru
      _
    // Predicated region
    $region14: #{tpu_custom_call.1} parent=1 // pred_check
      _
    $region15: #{tpu_custom_call.1} parent=1 // pred_check_branch
      %52 = sbr.rel (0) target = $region17
    $region16: #{tpu_custom_call.1} parent=1 // pred_region
      _
    $region17: #{tpu_custom_call.1} parent=1 // pred_fallthru
      _
    // Predicated region
    $region18: #{tpu_custom_call.1} parent=1 // pred_check
      _
    $region19: #{tpu_custom_call.1} parent=1 // pred_check_branch
      %54 = sbr.rel (0) target = $region21
    $region20: #{tpu_custom_call.1} parent=1 // pred_region
      _
    $region21: #{tpu_custom_call.1} parent=1 // pred_fallthru
      _
    // Predicated region
    $region22: #{tpu_custom_call.1} parent=1 // pred_check
      _
    $region23: #{tpu_custom_call.1} parent=1 // pred_check_branch
      %56 = sbr.rel (0) target = $region25
    $region24: #{tpu_custom_call.1} parent=1 // pred_region
      _
    $region25: #{tpu_custom_call.1} parent=1 // pred_fallthru
      _
    // Predicated region
    $region26: #{tpu_custom_call.1} parent=1 // pred_check
      _
    $region27: #{tpu_custom_call.1} parent=1 // pred_check_branch
      %58 = sbr.rel (0) target = $region29
    $region28: #{tpu_custom_call.1} parent=1 // pred_region
      %s60 = ssub.s32 512, 512
      %61 = vsyncadd [#allocation10], %s60
      %s62 = sshll.u32 [#allocation9], 4
      %s63 = int_to_ptr.vmem [resolvable:$true] %s62
      %68 = dma.hbm_to_vmem [thread:$0]  %s6, 512, %s63, [#allocation10], 128, 128, 8
    $region29: #{tpu_custom_call.1} parent=1 // pred_fallthru
      _
    // Predicated region
    $region30: #{tpu_custom_call.1} parent=1 // pred_check
      _
    $region31: #{tpu_custom_call.1} parent=1 // pred_check_branch
      %70 = sbr.rel (0) target = $region33
    $region32: #{tpu_custom_call.1} parent=1 // pred_region
      _
    $region33: #{tpu_custom_call.1} parent=1 // pred_fallthru
      _
    // Predicated region
    $region34: #{tpu_custom_call.1} parent=1 // pred_check
      _
    $region35: #{tpu_custom_call.1} parent=1 // pred_check_branch
      %72 = sbr.rel (0) target = $region37
    $region36: #{tpu_custom_call.1} parent=1 // pred_region
      %73 = dma.done [#allocation4], 256
    $region37: #{tpu_custom_call.1} parent=1 // pred_fallthru
      _
    // Predicated region
    $region38: #{tpu_custom_call.1} parent=1 // pred_check
      _
    $region39: #{tpu_custom_call.1} parent=1 // pred_check_branch
      %75 = sbr.rel (0) target = $region41
    $region40: #{tpu_custom_call.1} parent=1 // pred_region
      %76 = dma.done [#allocation7], 128
    $region41: #{tpu_custom_call.1} parent=1 // pred_fallthru
      _
    // Predicated region
    $region42: #{tpu_custom_call.1} parent=1 // pred_check
      _
    $region43: #{tpu_custom_call.1} parent=1 // pred_check_branch
      %78 = sbr.rel (0) target = $region45
    $region44: #{tpu_custom_call.1} parent=1 // pred_region
      %79 = dma.done [#allocation7], 512
    $region45: #{tpu_custom_call.1} parent=1 // pred_fallthru
      _
    // Predicated region
    $region46: #{tpu_custom_call.1} parent=1 // pred_check
      _
    $region47: #{tpu_custom_call.1} parent=1 // pred_check_branch
      %81 = sbr.rel (0) target = $region49
    $region48: #{tpu_custom_call.1} parent=1 // pred_region
      %82 = dma.done [#allocation10], 512
    $region49: #{tpu_custom_call.1} parent=1 // pred_fallthru
      _
    %v83 = vld [vmem:[#allocation3] sm:$0xff]
    %v84 = vld [vmem:[#allocation3 + $0x8] sm:$0xff]
    %v85 = vld [vmem:[#allocation8] sm:$0xff]
    %v86 = vld [vmem:[#allocation8 + $0x8] sm:$0xff]
    %v87 = vld [vmem:[#allocation8 + $0x10] sm:$0xff]
    %v88 = vld [vmem:[#allocation8 + $0x18] sm:$0xff]
    %v89 = vld [vmem:[%s3] sm:$0x1]
    %v90 = vld [vmem:[%s4] sm:$0x1]
    %v91 = vlaneseq
    %v92 = vand.u32 %v91, 127
    %v94 = vlaneseq
    %v95 = vshrl.u32 %v94, 7
    %v96 = vsub.s32 0, %v95
    %v97 = vrot.slane %v89, %v96
    %vm99 = vcmask 261120
    %v101 = vsel %vm99, %v83, 0
    %103 = vmatprep.subr.mxu0 0.0
    %104 = vmatpush1.msra.mxu0 %v85
    %105 = vmatprep.subr.mxu0 0.0
    %106 = vmatpush1.msra.mxu0 %v86
    %107 = vmatprep.subr.mxu0 0.0
    %108 = vmatpush1.msra.mxu0 %v87
    %109 = vmatprep.subr.mxu0 0.0
    %110 = vmatpush1.msra.mxu0 %v88
    %111 = vmatprep.subr.mxu0 0.0
    %112 = vmatpush1.msra.mxu0 0.0
    %113 = vmatprep.subr.mxu0 0.0
    %114 = vmatpush1.msra.mxu0 0.0
    %115 = vmatprep.subr.mxu0 0.0
    %116 = vmatpush1.msra.mxu0 0.0
    %117 = vmatprep.subr.mxu0 0.0
    %118 = vmatpush1.msra.mxu0 0.0
    %119 = vmatprep.subr.mxu0 0.0
    %120 = vmatpush1.msra.mxu0 0.0
    %121 = vmatprep.subr.mxu0 0.0
    %122 = vmatpush1.msra.mxu0 0.0
    %123 = vmatprep.subr.mxu0 0.0
    %124 = vmatpush1.msra.mxu0 0.0
    %125 = vmatprep.subr.mxu0 0.0
    %126 = vmatpush1.msra.mxu0 0.0
    %127 = vmatprep.subr.mxu0 0.0
    %128 = vmatpush1.msra.mxu0 0.0
    %129 = vmatprep.subr.mxu0 0.0
    %130 = vmatpush1.msra.mxu0 0.0
    %131 = vmatprep.subr.mxu0 0.0
    %132 = vmatpush1.msra.mxu0 0.0
    %133 = vmatprep.subr.mxu0 0.0
    %134 = vmatpush1.msra.mxu0 0.0
    %135 = vmatprep.subr.mxu0 0.0
    %136 = vmatpush1.msra.mxu0 0.0
    %137 = vmatprep.subr.mxu0 0.0
    %138 = vmatpush1.msra.mxu0 0.0
    %139 = vmatprep.subr.mxu0 0.0
    %140 = vmatpush1.msra.mxu0 0.0
    %141 = vmatprep.subr.mxu0 0.0
    %142 = vmatpush1.msra.mxu0 0.0
    %143 = vmatprep.subr.mxu0 0.0
    %144 = vmatpush1.msra.mxu0 0.0
    %145 = vmatprep.subr.mxu0 0.0
    %146 = vmatpush1.msra.mxu0 0.0
    %147 = vmatprep.subr.mxu0 0.0
    %148 = vmatpush1.msra.mxu0 0.0
    %149 = vmatprep.subr.mxu0 0.0
    %150 = vmatpush1.msra.mxu0 0.0
    %151 = vmatprep.subr.mxu0 0.0
    %152 = vmatpush1.msra.mxu0 0.0
    %153 = vmatprep.subr.mxu0 0.0
    %154 = vmatpush1.msra.mxu0 0.0
    %155 = vmatprep.subr.mxu0 0.0
    %156 = vmatpush1.msra.mxu0 0.0
    %157 = vmatprep.subr.mxu0 0.0
    %158 = vmatpush1.msra.mxu0 0.0
    %159 = vmatprep.subr.mxu0 0.0
    %160 = vmatpush1.msra.mxu0 0.0
    %161 = vmatprep.subr.mxu0 0.0
    %162 = vmatpush1.msra.mxu0 0.0
    %163 = vmatprep.subr.mxu0 0.0
    %164 = vmatpush1.msra.mxu0 0.0
    %165 = vmatprep.subr.mxu0 0.0
    %166 = vmatpush1.msra.mxu0 0.0
    %167 = vmatprep.mubr.f32.mxu0 0.0
    %168 = vmatmul.mubr.f32.gmra.mrb[0].mxu0 %v101
    %v169 = vpop.f32.mrb[0].mxu0
    %v170 = vadd.f32 %v97, %v169
    %v171 = vpop.f32.mrb[0].mxu0
    %172 = vdwg.mxu0
    %v173 = vmax.f32 %v170, 0.0
    %v175 = vlaneseq
    %v176 = vshrl.u32 %v175, 7
    %v177 = vsub.s32 0, %v176
    %v178 = vrot.slane %v90, %v177
    %v180 = vmul.f32 %v173, %v178
    %vm181 = vcmask 523264
    %v182 = vsel %vm181, %v180, 0.0
    %183 = vadd.xlane.f32.xlu0 %v182
    %v184 = vpop.xlane.xlu0 %183
    %vm185 = vcmp.eq.s32.totalorder %v92, 0
    %v186 = vsel %vm185, 1, 0
    %v187 = vcvt.s32.f32 %v186
    %v188 = vmul.f32 %v184, %v187
    %v189 = vadd.f32 %v188, 0.0
    %190 = vrot.lane.b32.xlu0 %v83, 96
    %v191 = vpop.permute.xlu0 %190
    %v192 = vsel %vm99, %v191, 0
    %194 = vmatprep.subr.mxu0 0.0
    %195 = vmatpush1.msra.mxu0 %v85
    %196 = vmatprep.subr.mxu0 0.0
    %197 = vmatpush1.msra.mxu0 %v86
    %198 = vmatprep.subr.mxu0 0.0
    %199 = vmatpush1.msra.mxu0 %v87
    %200 = vmatprep.subr.mxu0 0.0
    %201 = vmatpush1.msra.mxu0 %v88
    %202 = vmatprep.subr.mxu0 0.0
    %203 = vmatpush1.msra.mxu0 0.0
    %204 = vmatprep.subr.mxu0 0.0
    %205 = vmatpush1.msra.mxu0 0.0
    %206 = vmatprep.subr.mxu0 0.0
    %207 = vmatpush1.msra.mxu0 0.0
    %208 = vmatprep.subr.mxu0 0.0
    %209 = vmatpush1.msra.mxu0 0.0
    %210 = vmatprep.subr.mxu0 0.0
    %211 = vmatpush1.msra.mxu0 0.0
    %212 = vmatprep.subr.mxu0 0.0
    %213 = vmatpush1.msra.mxu0 0.0
    %214 = vmatprep.subr.mxu0 0.0
    %215 = vmatpush1.msra.mxu0 0.0
    %216 = vmatprep.subr.mxu0 0.0
    %217 = vmatpush1.msra.mxu0 0.0
    %218 = vmatprep.subr.mxu0 0.0
    %219 = vmatpush1.msra.mxu0 0.0
    %220 = vmatprep.subr.mxu0 0.0
    %221 = vmatpush1.msra.mxu0 0.0
    %222 = vmatprep.subr.mxu0 0.0
    %223 = vmatpush1.msra.mxu0 0.0
    %224 = vmatprep.subr.mxu0 0.0
    %225 = vmatpush1.msra.mxu0 0.0
    %226 = vmatprep.subr.mxu0 0.0
    %227 = vmatpush1.msra.mxu0 0.0
    %228 = vmatprep.subr.mxu0 0.0
    %229 = vmatpush1.msra.mxu0 0.0
    %230 = vmatprep.subr.mxu0 0.0
    %231 = vmatpush1.msra.mxu0 0.0
    %232 = vmatprep.subr.mxu0 0.0
    %233 = vmatpush1.msra.mxu0 0.0
    %234 = vmatprep.subr.mxu0 0.0
    %235 = vmatpush1.msra.mxu0 0.0
    %236 = vmatprep.subr.mxu0 0.0
    %237 = vmatpush1.msra.mxu0 0.0
    %238 = vmatprep.subr.mxu0 0.0
    %239 = vmatpush1.msra.mxu0 0.0
    %240 = vmatprep.subr.mxu0 0.0
    %241 = vmatpush1.msra.mxu0 0.0
    %242 = vmatprep.subr.mxu0 0.0
    %243 = vmatpush1.msra.mxu0 0.0
    %244 = vmatprep.subr.mxu0 0.0
    %245 = vmatpush1.msra.mxu0 0.0
    %246 = vmatprep.subr.mxu0 0.0
    %247 = vmatpush1.msra.mxu0 0.0
    %248 = vmatprep.subr.mxu0 0.0
    %249 = vmatpush1.msra.mxu0 0.0
    %250 = vmatprep.subr.mxu0 0.0
    %251 = vmatpush1.msra.mxu0 0.0
    %252 = vmatprep.subr.mxu0 0.0
    %253 = vmatpush1.msra.mxu0 0.0
    %254 = vmatprep.subr.mxu0 0.0
    %255 = vmatpush1.msra.mxu0 0.0
    %256 = vmatprep.subr.mxu0 0.0
    %257 = vmatpush1.msra.mxu0 0.0
    %258 = vmatprep.mubr.f32.mxu0 0.0
    %259 = vmatmul.mubr.f32.gmra.mrb[0].mxu0 %v192
    %v260 = vpop.f32.mrb[0].mxu0
    %v261 = vadd.f32 %v97, %v260
    %v262 = vpop.f32.mrb[0].mxu0
    %263 = vdwg.mxu0
    %v264 = vmax.f32 %v261, 0.0
    %v265 = vmul.f32 %v264, %v178
    %v266 = vsel %vm181, %v265, 0.0
    %267 = vadd.xlane.f32.xlu0 %v266
    %v268 = vpop.xlane.xlu0 %267
    %vm269 = vcmp.eq.s32.totalorder %v92, 1
    %v270 = vsel %vm269, 1, 0
    %v271 = vcvt.s32.f32 %v270
    %v272 = vmul.f32 %v268, %v271
    %v273 = vadd.f32 %v189, %v272
    %274 = vrot.lane.b32.xlu0 %v83, 64
    %v275 = vpop.permute.xlu0 %274
    %v276 = vsel %vm99, %v275, 0
    %278 = vmatprep.subr.mxu0 0.0
    %279 = vmatpush1.msra.mxu0 %v85
    %280 = vmatprep.subr.mxu0 0.0
    %281 = vmatpush1.msra.mxu0 %v86
    %282 = vmatprep.subr.mxu0 0.0
    %283 = vmatpush1.msra.mxu0 %v87
    %284 = vmatprep.subr.mxu0 0.0
    %285 = vmatpush1.msra.mxu0 %v88
    %286 = vmatprep.subr.mxu0 0.0
    %287 = vmatpush1.msra.mxu0 0.0
    %288 = vmatprep.subr.mxu0 0.0
    %289 = vmatpush1.msra.mxu0 0.0
    %290 = vmatprep.subr.mxu0 0.0
    %291 = vmatpush1.msra.mxu0 0.0
    %292 = vmatprep.subr.mxu0 0.0
    %293 = vmatpush1.msra.mxu0 0.0
    %294 = vmatprep.subr.mxu0 0.0
    %295 = vmatpush1.msra.mxu0 0.0
    %296 = vmatprep.subr.mxu0 0.0
    %297 = vmatpush1.msra.mxu0 0.0
    %298 = vmatprep.subr.mxu0 0.0
    %299 = vmatpush1.msra.mxu0 0.0
    %300 = vmatprep.subr.mxu0 0.0
    %301 = vmatpush1.msra.mxu0 0.0
    %302 = vmatprep.subr.mxu0 0.0
    %303 = vmatpush1.msra.mxu0 0.0
    %304 = vmatprep.subr.mxu0 0.0
    %305 = vmatpush1.msra.mxu0 0.0
    %306 = vmatprep.subr.mxu0 0.0
    %307 = vmatpush1.msra.mxu0 0.0
    %308 = vmatprep.subr.mxu0 0.0
    %309 = vmatpush1.msra.mxu0 0.0
    %310 = vmatprep.subr.mxu0 0.0
    %311 = vmatpush1.msra.mxu0 0.0
    %312 = vmatprep.subr.mxu0 0.0
    %313 = vmatpush1.msra.mxu0 0.0
    %314 = vmatprep.subr.mxu0 0.0
    %315 = vmatpush1.msra.mxu0 0.0
    %316 = vmatprep.subr.mxu0 0.0
    %317 = vmatpush1.msra.mxu0 0.0
    %318 = vmatprep.subr.mxu0 0.0
    %319 = vmatpush1.msra.mxu0 0.0
    %320 = vmatprep.subr.mxu0 0.0
    %321 = vmatpush1.msra.mxu0 0.0
    %322 = vmatprep.subr.mxu0 0.0
    %323 = vmatpush1.msra.mxu0 0.0
    %324 = vmatprep.subr.mxu0 0.0
    %325 = vmatpush1.msra.mxu0 0.0
    %326 = vmatprep.subr.mxu0 0.0
    %327 = vmatpush1.msra.mxu0 0.0
    %328 = vmatprep.subr.mxu0 0.0
    %329 = vmatpush1.msra.mxu0 0.0
    %330 = vmatprep.subr.mxu0 0.0
    %331 = vmatpush1.msra.mxu0 0.0
    %332 = vmatprep.subr.mxu0 0.0
    %333 = vmatpush1.msra.mxu0 0.0
    %334 = vmatprep.subr.mxu0 0.0
    %335 = vmatpush1.msra.mxu0 0.0
    %336 = vmatprep.subr.mxu0 0.0
    %337 = vmatpush1.msra.mxu0 0.0
    %338 = vmatprep.subr.mxu0 0.0
    %339 = vmatpush1.msra.mxu0 0.0
    %340 = vmatprep.subr.mxu0 0.0
    %341 = vmatpush1.msra.mxu0 0.0
    %342 = vmatprep.mubr.f32.mxu0 0.0
    %343 = vmatmul.mubr.f32.gmra.mrb[0].mxu0 %v276
    %v344 = vpop.f32.mrb[0].mxu0
    %v345 = vadd.f32 %v97, %v344
    %v346 = vpop.f32.mrb[0].mxu0
    %347 = vdwg.mxu0
    %v348 = vmax.f32 %v345, 0.0
    %v349 = vmul.f32 %v348, %v178
    %v350 = vsel %vm181, %v349, 0.0
    %351 = vadd.xlane.f32.xlu0 %v350
    %v352 = vpop.xlane.xlu0 %351
    %vm353 = vcmp.eq.s32.totalorder %v92, 2
    %v354 = vsel %vm353, 1, 0
    %v355 = vcvt.s32.f32 %v354
    %v356 = vmul.f32 %v352, %v355
    %v357 = vadd.f32 %v273, %v356
    %358 = vrot.lane.b32.xlu0 %v83, 32
    %v359 = vpop.permute.xlu0 %358
    %v360 = vsel %vm99, %v359, 0
    %362 = vmatprep.subr.mxu0 0.0
    %363 = vmatpush1.msra.mxu0 %v85
    %364 = vmatprep.subr.mxu0 0.0
    %365 = vmatpush1.msra.mxu0 %v86
    %366 = vmatprep.subr.mxu0 0.0
    %367 = vmatpush1.msra.mxu0 %v87
    %368 = vmatprep.subr.mxu0 0.0
    %369 = vmatpush1.msra.mxu0 %v88
    %370 = vmatprep.subr.mxu0 0.0
    %371 = vmatpush1.msra.mxu0 0.0
    %372 = vmatprep.subr.mxu0 0.0
    %373 = vmatpush1.msra.mxu0 0.0
    %374 = vmatprep.subr.mxu0 0.0
    %375 = vmatpush1.msra.mxu0 0.0
    %376 = vmatprep.subr.mxu0 0.0
    %377 = vmatpush1.msra.mxu0 0.0
    %378 = vmatprep.subr.mxu0 0.0
    %379 = vmatpush1.msra.mxu0 0.0
    %380 = vmatprep.subr.mxu0 0.0
    %381 = vmatpush1.msra.mxu0 0.0
    %382 = vmatprep.subr.mxu0 0.0
    %383 = vmatpush1.msra.mxu0 0.0
    %384 = vmatprep.subr.mxu0 0.0
    %385 = vmatpush1.msra.mxu0 0.0
    %386 = vmatprep.subr.mxu0 0.0
    %387 = vmatpush1.msra.mxu0 0.0
    %388 = vmatprep.subr.mxu0 0.0
    %389 = vmatpush1.msra.mxu0 0.0
    %390 = vmatprep.subr.mxu0 0.0
    %391 = vmatpush1.msra.mxu0 0.0
    %392 = vmatprep.subr.mxu0 0.0
    %393 = vmatpush1.msra.mxu0 0.0
    %394 = vmatprep.subr.mxu0 0.0
    %395 = vmatpush1.msra.mxu0 0.0
    %396 = vmatprep.subr.mxu0 0.0
    %397 = vmatpush1.msra.mxu0 0.0
    %398 = vmatprep.subr.mxu0 0.0
    %399 = vmatpush1.msra.mxu0 0.0
    %400 = vmatprep.subr.mxu0 0.0
    %401 = vmatpush1.msra.mxu0 0.0
    %402 = vmatprep.subr.mxu0 0.0
    %403 = vmatpush1.msra.mxu0 0.0
    %404 = vmatprep.subr.mxu0 0.0
    %405 = vmatpush1.msra.mxu0 0.0
    %406 = vmatprep.subr.mxu0 0.0
    %407 = vmatpush1.msra.mxu0 0.0
    %408 = vmatprep.subr.mxu0 0.0
    %409 = vmatpush1.msra.mxu0 0.0
    %410 = vmatprep.subr.mxu0 0.0
    %411 = vmatpush1.msra.mxu0 0.0
    %412 = vmatprep.subr.mxu0 0.0
    %413 = vmatpush1.msra.mxu0 0.0
    %414 = vmatprep.subr.mxu0 0.0
    %415 = vmatpush1.msra.mxu0 0.0
    %416 = vmatprep.subr.mxu0 0.0
    %417 = vmatpush1.msra.mxu0 0.0
    %418 = vmatprep.subr.mxu0 0.0
    %419 = vmatpush1.msra.mxu0 0.0
    %420 = vmatprep.subr.mxu0 0.0
    %421 = vmatpush1.msra.mxu0 0.0
    %422 = vmatprep.subr.mxu0 0.0
    %423 = vmatpush1.msra.mxu0 0.0
    %424 = vmatprep.subr.mxu0 0.0
    %425 = vmatpush1.msra.mxu0 0.0
    %426 = vmatprep.mubr.f32.mxu0 0.0
    %427 = vmatmul.mubr.f32.gmra.mrb[0].mxu0 %v360
    %v428 = vpop.f32.mrb[0].mxu0
    %v429 = vadd.f32 %v97, %v428
    %v430 = vpop.f32.mrb[0].mxu0
    %431 = vdwg.mxu0
    %v432 = vmax.f32 %v429, 0.0
    %v433 = vmul.f32 %v432, %v178
    %v434 = vsel %vm181, %v433, 0.0
    %435 = vadd.xlane.f32.xlu0 %v434
    %v436 = vpop.xlane.xlu0 %435
    %vm437 = vcmp.eq.s32.totalorder %v92, 3
    %v438 = vsel %vm437, 1, 0
    %v439 = vcvt.s32.f32 %v438
    %v440 = vmul.f32 %v436, %v439
    %v441 = vadd.f32 %v357, %v440
    %v443 = vsel %vm99, %v84, 0
    %445 = vmatprep.subr.mxu0 0.0
    %446 = vmatpush1.msra.mxu0 %v85
    %447 = vmatprep.subr.mxu0 0.0
    %448 = vmatpush1.msra.mxu0 %v86
    %449 = vmatprep.subr.mxu0 0.0
    %450 = vmatpush1.msra.mxu0 %v87
    %451 = vmatprep.subr.mxu0 0.0
    %452 = vmatpush1.msra.mxu0 %v88
    %453 = vmatprep.subr.mxu0 0.0
    %454 = vmatpush1.msra.mxu0 0.0
    %455 = vmatprep.subr.mxu0 0.0
    %456 = vmatpush1.msra.mxu0 0.0
    %457 = vmatprep.subr.mxu0 0.0
    %458 = vmatpush1.msra.mxu0 0.0
    %459 = vmatprep.subr.mxu0 0.0
    %460 = vmatpush1.msra.mxu0 0.0
    %461 = vmatprep.subr.mxu0 0.0
    %462 = vmatpush1.msra.mxu0 0.0
    %463 = vmatprep.subr.mxu0 0.0
    %464 = vmatpush1.msra.mxu0 0.0
    %465 = vmatprep.subr.mxu0 0.0
    %466 = vmatpush1.msra.mxu0 0.0
    %467 = vmatprep.subr.mxu0 0.0
    %468 = vmatpush1.msra.mxu0 0.0
    %469 = vmatprep.subr.mxu0 0.0
    %470 = vmatpush1.msra.mxu0 0.0
    %471 = vmatprep.subr.mxu0 0.0
    %472 = vmatpush1.msra.mxu0 0.0
    %473 = vmatprep.subr.mxu0 0.0
    %474 = vmatpush1.msra.mxu0 0.0
    %475 = vmatprep.subr.mxu0 0.0
    %476 = vmatpush1.msra.mxu0 0.0
    %477 = vmatprep.subr.mxu0 0.0
    %478 = vmatpush1.msra.mxu0 0.0
    %479 = vmatprep.subr.mxu0 0.0
    %480 = vmatpush1.msra.mxu0 0.0
    %481 = vmatprep.subr.mxu0 0.0
    %482 = vmatpush1.msra.mxu0 0.0
    %483 = vmatprep.subr.mxu0 0.0
    %484 = vmatpush1.msra.mxu0 0.0
    %485 = vmatprep.subr.mxu0 0.0
    %486 = vmatpush1.msra.mxu0 0.0
    %487 = vmatprep.subr.mxu0 0.0
    %488 = vmatpush1.msra.mxu0 0.0
    %489 = vmatprep.subr.mxu0 0.0
    %490 = vmatpush1.msra.mxu0 0.0
    %491 = vmatprep.subr.mxu0 0.0
    %492 = vmatpush1.msra.mxu0 0.0
    %493 = vmatprep.subr.mxu0 0.0
    %494 = vmatpush1.msra.mxu0 0.0
    %495 = vmatprep.subr.mxu0 0.0
    %496 = vmatpush1.msra.mxu0 0.0
    %497 = vmatprep.subr.mxu0 0.0
    %498 = vmatpush1.msra.mxu0 0.0
    %499 = vmatprep.subr.mxu0 0.0
    %500 = vmatpush1.msra.mxu0 0.0
    %501 = vmatprep.subr.mxu0 0.0
    %502 = vmatpush1.msra.mxu0 0.0
    %503 = vmatprep.subr.mxu0 0.0
    %504 = vmatpush1.msra.mxu0 0.0
    %505 = vmatprep.subr.mxu0 0.0
    %506 = vmatpush1.msra.mxu0 0.0
    %507 = vmatprep.subr.mxu0 0.0
    %508 = vmatpush1.msra.mxu0 0.0
    %509 = vmatprep.mubr.f32.mxu0 0.0
    %510 = vmatmul.mubr.f32.gmra.mrb[0].mxu0 %v443
    %v511 = vpop.f32.mrb[0].mxu0
    %v512 = vadd.f32 %v97, %v511
    %v513 = vpop.f32.mrb[0].mxu0
    %514 = vdwg.mxu0
    %v515 = vmax.f32 %v512, 0.0
    %v516 = vmul.f32 %v515, %v178
    %v517 = vsel %vm181, %v516, 0.0
    %518 = vadd.xlane.f32.xlu0 %v517
    %v519 = vpop.xlane.xlu0 %518
    %vm520 = vcmp.eq.s32.totalorder %v92, 4
    %v521 = vsel %vm520, 1, 0
    %v522 = vcvt.s32.f32 %v521
    %v523 = vmul.f32 %v519, %v522
    %v524 = vadd.f32 %v441, %v523
    %525 = vrot.lane.b32.xlu0 %v84, 96
    %v526 = vpop.permute.xlu0 %525
    %v527 = vsel %vm99, %v526, 0
    %529 = vmatprep.subr.mxu0 0.0
    %530 = vmatpush1.msra.mxu0 %v85
    %531 = vmatprep.subr.mxu0 0.0
    %532 = vmatpush1.msra.mxu0 %v86
    %533 = vmatprep.subr.mxu0 0.0
    %534 = vmatpush1.msra.mxu0 %v87
    %535 = vmatprep.subr.mxu0 0.0
    %536 = vmatpush1.msra.mxu0 %v88
    %537 = vmatprep.subr.mxu0 0.0
    %538 = vmatpush1.msra.mxu0 0.0
    %539 = vmatprep.subr.mxu0 0.0
    %540 = vmatpush1.msra.mxu0 0.0
    %541 = vmatprep.subr.mxu0 0.0
    %542 = vmatpush1.msra.mxu0 0.0
    %543 = vmatprep.subr.mxu0 0.0
    %544 = vmatpush1.msra.mxu0 0.0
    %545 = vmatprep.subr.mxu0 0.0
    %546 = vmatpush1.msra.mxu0 0.0
    %547 = vmatprep.subr.mxu0 0.0
    %548 = vmatpush1.msra.mxu0 0.0
    %549 = vmatprep.subr.mxu0 0.0
    %550 = vmatpush1.msra.mxu0 0.0
    %551 = vmatprep.subr.mxu0 0.0
    %552 = vmatpush1.msra.mxu0 0.0
    %553 = vmatprep.subr.mxu0 0.0
    %554 = vmatpush1.msra.mxu0 0.0
    %555 = vmatprep.subr.mxu0 0.0
    %556 = vmatpush1.msra.mxu0 0.0
    %557 = vmatprep.subr.mxu0 0.0
    %558 = vmatpush1.msra.mxu0 0.0
    %559 = vmatprep.subr.mxu0 0.0
    %560 = vmatpush1.msra.mxu0 0.0
    %561 = vmatprep.subr.mxu0 0.0
    %562 = vmatpush1.msra.mxu0 0.0
    %563 = vmatprep.subr.mxu0 0.0
    %564 = vmatpush1.msra.mxu0 0.0
    %565 = vmatprep.subr.mxu0 0.0
    %566 = vmatpush1.msra.mxu0 0.0
    %567 = vmatprep.subr.mxu0 0.0
    %568 = vmatpush1.msra.mxu0 0.0
    %569 = vmatprep.subr.mxu0 0.0
    %570 = vmatpush1.msra.mxu0 0.0
    %571 = vmatprep.subr.mxu0 0.0
    %572 = vmatpush1.msra.mxu0 0.0
    %573 = vmatprep.subr.mxu0 0.0
    %574 = vmatpush1.msra.mxu0 0.0
    %575 = vmatprep.subr.mxu0 0.0
    %576 = vmatpush1.msra.mxu0 0.0
    %577 = vmatprep.subr.mxu0 0.0
    %578 = vmatpush1.msra.mxu0 0.0
    %579 = vmatprep.subr.mxu0 0.0
    %580 = vmatpush1.msra.mxu0 0.0
    %581 = vmatprep.subr.mxu0 0.0
    %582 = vmatpush1.msra.mxu0 0.0
    %583 = vmatprep.subr.mxu0 0.0
    %584 = vmatpush1.msra.mxu0 0.0
    %585 = vmatprep.subr.mxu0 0.0
    %586 = vmatpush1.msra.mxu0 0.0
    %587 = vmatprep.subr.mxu0 0.0
    %588 = vmatpush1.msra.mxu0 0.0
    %589 = vmatprep.subr.mxu0 0.0
    %590 = vmatpush1.msra.mxu0 0.0
    %591 = vmatprep.subr.mxu0 0.0
    %592 = vmatpush1.msra.mxu0 0.0
    %593 = vmatprep.mubr.f32.mxu0 0.0
    %594 = vmatmul.mubr.f32.gmra.mrb[0].mxu0 %v527
    %v595 = vpop.f32.mrb[0].mxu0
    %v596 = vadd.f32 %v97, %v595
    %v597 = vpop.f32.mrb[0].mxu0
    %598 = vdwg.mxu0
    %v599 = vmax.f32 %v596, 0.0
    %v600 = vmul.f32 %v599, %v178
    %v601 = vsel %vm181, %v600, 0.0
    %602 = vadd.xlane.f32.xlu0 %v601
    %v603 = vpop.xlane.xlu0 %602
    %vm604 = vcmp.eq.s32.totalorder %v92, 5
    %v605 = vsel %vm604, 1, 0
    %v606 = vcvt.s32.f32 %v605
    %v607 = vmul.f32 %v603, %v606
    %v608 = vadd.f32 %v524, %v607
    %609 = vrot.lane.b32.xlu0 %v84, 64
    %v610 = vpop.permute.xlu0 %609
    %v611 = vsel %vm99, %v610, 0
    %613 = vmatprep.subr.mxu0 0.0
    %614 = vmatpush1.msra.mxu0 %v85
    %615 = vmatprep.subr.mxu0 0.0
    %616 = vmatpush1.msra.mxu0 %v86
    %617 = vmatprep.subr.mxu0 0.0
    %618 = vmatpush1.msra.mxu0 %v87
    %619 = vmatprep.subr.mxu0 0.0
    %620 = vmatpush1.msra.mxu0 %v88
    %621 = vmatprep.subr.mxu0 0.0
    %622 = vmatpush1.msra.mxu0 0.0
    %623 = vmatprep.subr.mxu0 0.0
    %624 = vmatpush1.msra.mxu0 0.0
    %625 = vmatprep.subr.mxu0 0.0
    %626 = vmatpush1.msra.mxu0 0.0
    %627 = vmatprep.subr.mxu0 0.0
    %628 = vmatpush1.msra.mxu0 0.0
    %629 = vmatprep.subr.mxu0 0.0
    %630 = vmatpush1.msra.mxu0 0.0
    %631 = vmatprep.subr.mxu0 0.0
    %632 = vmatpush1.msra.mxu0 0.0
    %633 = vmatprep.subr.mxu0 0.0
    %634 = vmatpush1.msra.mxu0 0.0
    %635 = vmatprep.subr.mxu0 0.0
    %636 = vmatpush1.msra.mxu0 0.0
    %637 = vmatprep.subr.mxu0 0.0
    %638 = vmatpush1.msra.mxu0 0.0
    %639 = vmatprep.subr.mxu0 0.0
    %640 = vmatpush1.msra.mxu0 0.0
    %641 = vmatprep.subr.mxu0 0.0
    %642 = vmatpush1.msra.mxu0 0.0
    %643 = vmatprep.subr.mxu0 0.0
    %644 = vmatpush1.msra.mxu0 0.0
    %645 = vmatprep.subr.mxu0 0.0
    %646 = vmatpush1.msra.mxu0 0.0
    %647 = vmatprep.subr.mxu0 0.0
    %648 = vmatpush1.msra.mxu0 0.0
    %649 = vmatprep.subr.mxu0 0.0
    %650 = vmatpush1.msra.mxu0 0.0
    %651 = vmatprep.subr.mxu0 0.0
    %652 = vmatpush1.msra.mxu0 0.0
    %653 = vmatprep.subr.mxu0 0.0
    %654 = vmatpush1.msra.mxu0 0.0
    %655 = vmatprep.subr.mxu0 0.0
    %656 = vmatpush1.msra.mxu0 0.0
    %657 = vmatprep.subr.mxu0 0.0
    %658 = vmatpush1.msra.mxu0 0.0
    %659 = vmatprep.subr.mxu0 0.0
    %660 = vmatpush1.msra.mxu0 0.0
    %661 = vmatprep.subr.mxu0 0.0
    %662 = vmatpush1.msra.mxu0 0.0
    %663 = vmatprep.subr.mxu0 0.0
    %664 = vmatpush1.msra.mxu0 0.0
    %665 = vmatprep.subr.mxu0 0.0
    %666 = vmatpush1.msra.mxu0 0.0
    %667 = vmatprep.subr.mxu0 0.0
    %668 = vmatpush1.msra.mxu0 0.0
    %669 = vmatprep.subr.mxu0 0.0
    %670 = vmatpush1.msra.mxu0 0.0
    %671 = vmatprep.subr.mxu0 0.0
    %672 = vmatpush1.msra.mxu0 0.0
    %673 = vmatprep.subr.mxu0 0.0
    %674 = vmatpush1.msra.mxu0 0.0
    %675 = vmatprep.subr.mxu0 0.0
    %676 = vmatpush1.msra.mxu0 0.0
    %677 = vmatprep.mubr.f32.mxu0 0.0
    %678 = vmatmul.mubr.f32.gmra.mrb[0].mxu0 %v611
    %v679 = vpop.f32.mrb[0].mxu0
    %v680 = vadd.f32 %v97, %v679
    %v681 = vpop.f32.mrb[0].mxu0
    %682 = vdwg.mxu0
    %v683 = vmax.f32 %v680, 0.0
    %v684 = vmul.f32 %v683, %v178
    %v685 = vsel %vm181, %v684, 0.0
    %686 = vadd.xlane.f32.xlu0 %v685
    %v687 = vpop.xlane.xlu0 %686
    %vm688 = vcmp.eq.s32.totalorder %v92, 6
    %v689 = vsel %vm688, 1, 0
    %v690 = vcvt.s32.f32 %v689
    %v691 = vmul.f32 %v687, %v690
    %v692 = vadd.f32 %v608, %v691
    %693 = vrot.lane.b32.xlu0 %v84, 32
    %v694 = vpop.permute.xlu0 %693
    %v695 = vsel %vm99, %v694, 0
    %697 = vmatprep.subr.mxu0 0.0
    %698 = vmatpush1.msra.mxu0 %v85
    %699 = vmatprep.subr.mxu0 0.0
    %700 = vmatpush1.msra.mxu0 %v86
    %701 = vmatprep.subr.mxu0 0.0
    %702 = vmatpush1.msra.mxu0 %v87
    %703 = vmatprep.subr.mxu0 0.0
    %704 = vmatpush1.msra.mxu0 %v88
    %705 = vmatprep.subr.mxu0 0.0
    %706 = vmatpush1.msra.mxu0 0.0
    %707 = vmatprep.subr.mxu0 0.0
    %708 = vmatpush1.msra.mxu0 0.0
    %709 = vmatprep.subr.mxu0 0.0
    %710 = vmatpush1.msra.mxu0 0.0
    %711 = vmatprep.subr.mxu0 0.0
    %712 = vmatpush1.msra.mxu0 0.0
    %713 = vmatprep.subr.mxu0 0.0
    %714 = vmatpush1.msra.mxu0 0.0
    %715 = vmatprep.subr.mxu0 0.0
    %716 = vmatpush1.msra.mxu0 0.0
    %717 = vmatprep.subr.mxu0 0.0
    %718 = vmatpush1.msra.mxu0 0.0
    %719 = vmatprep.subr.mxu0 0.0
    %720 = vmatpush1.msra.mxu0 0.0
    %721 = vmatprep.subr.mxu0 0.0
    %722 = vmatpush1.msra.mxu0 0.0
    %723 = vmatprep.subr.mxu0 0.0
    %724 = vmatpush1.msra.mxu0 0.0
    %725 = vmatprep.subr.mxu0 0.0
    %726 = vmatpush1.msra.mxu0 0.0
    %727 = vmatprep.subr.mxu0 0.0
    %728 = vmatpush1.msra.mxu0 0.0
    %729 = vmatprep.subr.mxu0 0.0
    %730 = vmatpush1.msra.mxu0 0.0
    %731 = vmatprep.subr.mxu0 0.0
    %732 = vmatpush1.msra.mxu0 0.0
    %733 = vmatprep.subr.mxu0 0.0
    %734 = vmatpush1.msra.mxu0 0.0
    %735 = vmatprep.subr.mxu0 0.0
    %736 = vmatpush1.msra.mxu0 0.0
    %737 = vmatprep.subr.mxu0 0.0
    %738 = vmatpush1.msra.mxu0 0.0
    %739 = vmatprep.subr.mxu0 0.0
    %740 = vmatpush1.msra.mxu0 0.0
    %741 = vmatprep.subr.mxu0 0.0
    %742 = vmatpush1.msra.mxu0 0.0
    %743 = vmatprep.subr.mxu0 0.0
    %744 = vmatpush1.msra.mxu0 0.0
    %745 = vmatprep.subr.mxu0 0.0
    %746 = vmatpush1.msra.mxu0 0.0
    %747 = vmatprep.subr.mxu0 0.0
    %748 = vmatpush1.msra.mxu0 0.0
    %749 = vmatprep.subr.mxu0 0.0
    %750 = vmatpush1.msra.mxu0 0.0
    %751 = vmatprep.subr.mxu0 0.0
    %752 = vmatpush1.msra.mxu0 0.0
    %753 = vmatprep.subr.mxu0 0.0
    %754 = vmatpush1.msra.mxu0 0.0
    %755 = vmatprep.subr.mxu0 0.0
    %756 = vmatpush1.msra.mxu0 0.0
    %757 = vmatprep.subr.mxu0 0.0
    %758 = vmatpush1.msra.mxu0 0.0
    %759 = vmatprep.subr.mxu0 0.0
    %760 = vmatpush1.msra.mxu0 0.0
    %761 = vmatprep.mubr.f32.mxu0 0.0
    %762 = vmatmul.mubr.f32.gmra.mrb[0].mxu0 %v695
    %v763 = vpop.f32.mrb[0].mxu0
    %v764 = vadd.f32 %v97, %v763
    %v765 = vpop.f32.mrb[0].mxu0
    %766 = vdwg.mxu0
    %v767 = vmax.f32 %v764, 0.0
    %v768 = vmul.f32 %v767, %v178
    %v769 = vsel %vm181, %v768, 0.0
    %770 = vadd.xlane.f32.xlu0 %v769
    %v771 = vpop.xlane.xlu0 %770
    %vm772 = vcmp.eq.s32.totalorder %v92, 7
    %v773 = vsel %vm772, 1, 0
    %v774 = vcvt.s32.f32 %v773
    %v775 = vmul.f32 %v771, %v774
    %v776 = vadd.f32 %v692, %v775
    %v777 = vld [vmem:[#allocation2] sm:$0x1]
    %v779 = vlaneseq
    %v780 = vshrl.u32 %v779, 7
    %v781 = vsub.s32 0, %v780
    %v782 = vrot.slane %v777, %v781
    %783 = vset.pattern.permute.xlu0 0
    %784 = vperm.xlu0 %783, %v782
    %v785 = vpop.permute.xlu0 %784
    %v787 = vadd.f32 %v776, %v785
    %v788 = vld [vmem:[#allocation6] sm:$0xff]
    %vm789 = vcmp.gt.f32.partialorder %v788, 0.5
    %v790 = vsel %vm789, -1e+09, %v787
    %vm791 = vcmask 64512
    %v792 = vsel %vm791, %v790, -inf
    %793 = vmax.xlane.f32.xlu0 %v792
    %v794 = vpop.xlane.xlu0 %793
    %v795 = vsub.f32 %v790, %v794
    %v796 = vmul.f32 %v795, 1.442695
    %v797 = vpow.pop %v796
    %v798 = vsel %vm791, %v797, 0.0
    %799 = vadd.xlane.f32.xlu0 %v798
    %v800 = vpop.xlane.xlu0 %799
    %v801 = vrcp.pop %v800
    %v802 = vmul.f32 %v797, %v801
    %804 = vset.pattern.permute.xlu0 0
    %805 = vperm.xlu0 %804, %v802
    %v806 = vpop.permute.xlu0 %805
    %v808 = vmul.f32 %v806, %v83
    %v809 = vadd.f32 %v808, 0.0
    %810 = vset.pattern.permute.xlu0 1
    %811 = vperm.xlu0 %810, %v802
    %v812 = vpop.permute.xlu0 %811
    %v814 = vmul.f32 %v812, %v83
    %816 = vrot.lane.b32.xlu0 %v814, 96
    %v817 = vpop.permute.xlu0 %816
    %v819 = vadd.f32 %v809, %v817
    %820 = vset.pattern.permute.xlu0 2
    %821 = vperm.xlu0 %820, %v802
    %v822 = vpop.permute.xlu0 %821
    %v824 = vmul.f32 %v822, %v83
    %826 = vrot.lane.b32.xlu0 %v824, 64
    %v827 = vpop.permute.xlu0 %826
    %v829 = vadd.f32 %v819, %v827
    %830 = vset.pattern.permute.xlu0 3
    %831 = vperm.xlu0 %830, %v802
    %v832 = vpop.permute.xlu0 %831
    %v834 = vmul.f32 %v832, %v83
    %836 = vrot.lane.b32.xlu0 %v834, 32
    %v837 = vpop.permute.xlu0 %836
    %v839 = vadd.f32 %v829, %v837
    %840 = vset.pattern.permute.xlu0 4
    %841 = vperm.xlu0 %840, %v802
    %v842 = vpop.permute.xlu0 %841
    %v844 = vmul.f32 %v842, %v84
    %v845 = vadd.f32 %v839, %v844
    %846 = vset.pattern.permute.xlu0 5
    %847 = vperm.xlu0 %846, %v802
    %v848 = vpop.permute.xlu0 %847
    %v850 = vmul.f32 %v848, %v84
    %852 = vrot.lane.b32.xlu0 %v850, 96
    %v853 = vpop.permute.xlu0 %852
    %v855 = vadd.f32 %v845, %v853
    %856 = vset.pattern.permute.xlu0 6
    %857 = vperm.xlu0 %856, %v802
    %v858 = vpop.permute.xlu0 %857
    %v860 = vmul.f32 %v858, %v84
    %862 = vrot.lane.b32.xlu0 %v860, 64
    %v863 = vpop.permute.xlu0 %862
    %v865 = vadd.f32 %v855, %v863
    %866 = vset.pattern.permute.xlu0 7
    %867 = vperm.xlu0 %866, %v802
    %v868 = vpop.permute.xlu0 %867
    %v870 = vmul.f32 %v868, %v84
    %872 = vrot.lane.b32.xlu0 %v870, 32
    %v873 = vpop.permute.xlu0 %872
    %v875 = vadd.f32 %v865, %v873
    %v876 = vld [vmem:[#allocation9] sm:$0xff]
    %v877 = vld [vmem:[#allocation9 + $0x8] sm:$0xff]
    %v878 = vld [vmem:[#allocation9 + $0x10] sm:$0xff]
    %v879 = vld [vmem:[#allocation9 + $0x18] sm:$0xff]
    %v880 = vld [vmem:[%s7] sm:$0x1]
    %v882 = vlaneseq
    %v883 = vshrl.u32 %v882, 7
    %v884 = vsub.s32 0, %v883
    %v885 = vrot.slane %v880, %v884
    %v888 = vsel %vm99, %v875, 0
    %890 = vmatprep.subr.mxu0 0.0
    %891 = vmatpush1.msra.mxu0 %v876
    %892 = vmatprep.subr.mxu0 0.0
    %893 = vmatpush1.msra.mxu0 %v877
    %894 = vmatprep.subr.mxu0 0.0
    %895 = vmatpush1.msra.mxu0 %v878
    %896 = vmatprep.subr.mxu0 0.0
    %897 = vmatpush1.msra.mxu0 %v879
    %898 = vmatprep.subr.mxu0 0.0
    %899 = vmatpush1.msra.mxu0 0.0
    %900 = vmatprep.subr.mxu0 0.0
    %901 = vmatpush1.msra.mxu0 0.0
    %902 = vmatprep.subr.mxu0 0.0
    %903 = vmatpush1.msra.mxu0 0.0
    %904 = vmatprep.subr.mxu0 0.0
    %905 = vmatpush1.msra.mxu0 0.0
    %906 = vmatprep.subr.mxu0 0.0
    %907 = vmatpush1.msra.mxu0 0.0
    %908 = vmatprep.subr.mxu0 0.0
    %909 = vmatpush1.msra.mxu0 0.0
    %910 = vmatprep.subr.mxu0 0.0
    %911 = vmatpush1.msra.mxu0 0.0
    %912 = vmatprep.subr.mxu0 0.0
    %913 = vmatpush1.msra.mxu0 0.0
    %914 = vmatprep.subr.mxu0 0.0
    %915 = vmatpush1.msra.mxu0 0.0
    %916 = vmatprep.subr.mxu0 0.0
    %917 = vmatpush1.msra.mxu0 0.0
    %918 = vmatprep.subr.mxu0 0.0
    %919 = vmatpush1.msra.mxu0 0.0
    %920 = vmatprep.subr.mxu0 0.0
    %921 = vmatpush1.msra.mxu0 0.0
    %922 = vmatprep.subr.mxu0 0.0
    %923 = vmatpush1.msra.mxu0 0.0
    %924 = vmatprep.subr.mxu0 0.0
    %925 = vmatpush1.msra.mxu0 0.0
    %926 = vmatprep.subr.mxu0 0.0
    %927 = vmatpush1.msra.mxu0 0.0
    %928 = vmatprep.subr.mxu0 0.0
    %929 = vmatpush1.msra.mxu0 0.0
    %930 = vmatprep.subr.mxu0 0.0
    %931 = vmatpush1.msra.mxu0 0.0
    %932 = vmatprep.subr.mxu0 0.0
    %933 = vmatpush1.msra.mxu0 0.0
    %934 = vmatprep.subr.mxu0 0.0
    %935 = vmatpush1.msra.mxu0 0.0
    %936 = vmatprep.subr.mxu0 0.0
    %937 = vmatpush1.msra.mxu0 0.0
    %938 = vmatprep.subr.mxu0 0.0
    %939 = vmatpush1.msra.mxu0 0.0
    %940 = vmatprep.subr.mxu0 0.0
    %941 = vmatpush1.msra.mxu0 0.0
    %942 = vmatprep.subr.mxu0 0.0
    %943 = vmatpush1.msra.mxu0 0.0
    %944 = vmatprep.subr.mxu0 0.0
    %945 = vmatpush1.msra.mxu0 0.0
    %946 = vmatprep.subr.mxu0 0.0
    %947 = vmatpush1.msra.mxu0 0.0
    %948 = vmatprep.subr.mxu0 0.0
    %949 = vmatpush1.msra.mxu0 0.0
    %950 = vmatprep.subr.mxu0 0.0
    %951 = vmatpush1.msra.mxu0 0.0
    %952 = vmatprep.subr.mxu0 0.0
    %953 = vmatpush1.msra.mxu0 0.0
    %954 = vmatprep.mubr.f32.mxu0 0.0
    %955 = vmatmul.mubr.f32.gmra.mrb[0].mxu0 %v888
    %v956 = vpop.f32.mrb[0].mxu0
    %v957 = vadd.f32 %v885, %v956
    %v958 = vpop.f32.mrb[0].mxu0
    %959 = vdwg.mxu0
    %960 = vst.msk [vmem:[#allocation11] sm:$0xff] %vm181, %v957
    // Predicated region
    $region50: #{tpu_custom_call.1} parent=1 // pred_check
      _
    $region51: #{tpu_custom_call.1} parent=1 // pred_check_branch
      %962 = sbr.rel (0) target = $region53
    $region52: #{tpu_custom_call.1} parent=1 // pred_region
      %s964 = ssub.s32 128, 128
      %965 = vsyncadd [#allocation5], %s964
      %s967 = sshll.u32 [#allocation11], 4
      %s968 = int_to_ptr.vmem [resolvable:$true] %s967
      %970 = dma.vmem_to_hbm [thread:$0]  %s968, 128, %s8, [#allocation5]
    $region53: #{tpu_custom_call.1} parent=1 // pred_fallthru
      _
    // Predicated region
    $region54: #{tpu_custom_call.1} parent=1 // pred_check
      _
    $region55: #{tpu_custom_call.1} parent=1 // pred_check_branch
      %972 = sbr.rel (0) target = $region57
    $region56: #{tpu_custom_call.1} parent=1 // pred_region
      %973 = dma.done [#allocation5], 128
    $region57: #{tpu_custom_call.1} parent=1 // pred_fallthru
      _
    %974 = vsyncpa [#allocation4], 1
    %975 = vsyncpa [#allocation7], 1
    %976 = vsyncpa [#allocation10], 1
    %977 = vsyncpa [#allocation5], 1

</llo_original>
